<compile_context>
chip_gen: v6e
topology: v6e:2x2x1
jax: 0.10.0
libtpu: 0.0.40
codegen_flags: <defaults>
</compile_context>

<pallas_src>
import jax
import jax.numpy as jnp
from jax.experimental import pallas as pl
from jax.experimental.pallas import tpu as pltpu


def _ff_kernel(x_ref, w1_ref, b1_ref, w2_ref, b2_ref, o_ref):
    # x_ref : (TR, D)   input row tile, native dtype
    # w1_ref: (D, H)    first linear weight  (= torch W1.weight.T)
    # b1_ref: (1, H)
    # w2_ref: (H, Do)   second linear weight (= torch W2.weight.T)
    # b2_ref: (1, Do)
    # o_ref : (TR, Do)
    x = x_ref[...]
    h = jnp.dot(x, w1_ref[...], preferred_element_type=jnp.float32)
    h = jnp.maximum(h + b1_ref[...].astype(jnp.float32), 0.0)
    out = jnp.dot(h.astype(w2_ref.dtype), w2_ref[...],
                  preferred_element_type=jnp.float32)
    out = out + b2_ref[...].astype(jnp.float32)
    o_ref[...] = out.astype(o_ref.dtype)


def _round_up(a, m):
    return (a + m - 1) // m * m


def feed_forward(x, w1, b1, w2, b2, *, row_tile_cap=1024):
    """y = relu(x @ w1 + b1) @ w2 + b2 over the last dim of x.

    w1: (D, H), b1: (H,), w2: (H, D_out), b2: (D_out,)
    (w1 / w2 are the transposes of torch.nn.Linear.weight, i.e. laid out for
     right-multiplication.)
    """
    D = x.shape[-1]
    H = w1.shape[1]
    D_out = w2.shape[1]
    lead = x.shape[:-1]

    x2d = x.reshape(-1, D)
    R = x2d.shape[0]

    # Largest sensible row tile (multiple of 8 sublanes). Ragged last block is
    # handled by Pallas -> no padding copy, no out[:R] slice needed.
    row_tile = min(row_tile_cap, _round_up(R, 8))
    grid = (pl.cdiv(R, row_tile),)

    b1_2d = b1.reshape(1, H)
    b2_2d = b2.reshape(1, D_out)

    out2d = pl.pallas_call(
        _ff_kernel,
        out_shape=jax.ShapeDtypeStruct((R, D_out), x.dtype),
        grid=grid,
        in_specs=[
            pl.BlockSpec((row_tile, D), lambda i: (i, 0)),   # x row tile
            pl.BlockSpec((D, H), lambda i: (0, 0)),          # W1 (resident)
            pl.BlockSpec((1, H), lambda i: (0, 0)),          # b1
            pl.BlockSpec((H, D_out), lambda i: (0, 0)),      # W2 (resident)
            pl.BlockSpec((1, D_out), lambda i: (0, 0)),      # b2
        ],
        out_specs=pl.BlockSpec((row_tile, D_out), lambda i: (i, 0)),
        compiler_params=pltpu.CompilerParams(
            dimension_semantics=("parallel",)),
    )(x2d, w1, b1_2d, w2, b2_2d)

    return out2d.reshape(*lead, D_out)


def reference(x, w1, b1, w2, b2):
    h = jnp.maximum(jnp.dot(x, w1) + b1, 0.0)
    return jnp.dot(h, w2) + b2


if __name__ == "__main__":
    key = jax.random.PRNGKey(0)

    # LEHD CVRP model params (kept small / TPU-aligned).
    embedding_dim = 128
    ff_hidden_dim = 512
    batch, seq = 2, 8

    k_x, k_w1, k_b1, k_w2, k_b2 = jax.random.split(key, 5)

    # Parameter init matching torch.nn.Linear's U(-1/sqrt(fan_in), 1/sqrt(fan_in))
    # scale (deterministic via PRNGKey(0)); stored pre-transposed for x @ W.
    s1 = 1.0 / jnp.sqrt(jnp.float32(embedding_dim))
    s2 = 1.0 / jnp.sqrt(jnp.float32(ff_hidden_dim))
    w1 = jax.random.uniform(k_w1, (embedding_dim, ff_hidden_dim),
                            jnp.float32, -s1, s1)
    b1 = jax.random.uniform(k_b1, (ff_hidden_dim,), jnp.float32, -s1, s1)
    w2 = jax.random.uniform(k_w2, (ff_hidden_dim, embedding_dim),
                            jnp.float32, -s2, s2)
    b2 = jax.random.uniform(k_b2, (embedding_dim,), jnp.float32, -s2, s2)

    x = jax.random.normal(k_x, (batch, seq, embedding_dim), jnp.float32)

    out = feed_forward(x, w1, b1, w2, b2)
    out = jax.block_until_ready(out)

    ref = reference(x, w1, b1, w2, b2)
    assert out.shape == ref.shape
    assert out.dtype == x.dtype
    assert jnp.allclose(out, ref, atol=1e-2, rtol=1e-2)

    print("KERNEL_OK")
</pallas_src>

<mosaic_0001>
module attributes {stable_mosaic.version = 11 : i64} {
  func.func @_ff_kernel(%arg0: i32, %arg1: memref<16x128xf32, #tpu.memory_space<vmem>>, %arg2: memref<128x512xf32, #tpu.memory_space<vmem>>, %arg3: memref<1x512xf32, #tpu.memory_space<vmem>>, %arg4: memref<512x128xf32, #tpu.memory_space<vmem>>, %arg5: memref<1x128xf32, #tpu.memory_space<vmem>>, %arg6: memref<16x128xf32, #tpu.memory_space<vmem>>) attributes {dimension_semantics = [#tpu.dimension_semantics<parallel>], iteration_bounds = array<i64: 1>, scalar_prefetch = 0 : i64, scratch_operands = 0 : i64, tpu.core_type = #tpu.core_type<tc>, window_params = [{transform_indices = @transform_0, window_bounds = array<i64: 16, 128>}, {pipeline_mode = #tpu.pipeline_mode<synchronous>, transform_indices = @transform_1, window_bounds = array<i64: 128, 512>}, {pipeline_mode = #tpu.pipeline_mode<synchronous>, transform_indices = @transform_2, window_bounds = array<i64: 1, 512>}, {pipeline_mode = #tpu.pipeline_mode<synchronous>, transform_indices = @transform_3, window_bounds = array<i64: 512, 128>}, {pipeline_mode = #tpu.pipeline_mode<synchronous>, transform_indices = @transform_4, window_bounds = array<i64: 1, 128>}, {transform_indices = @transform_5, window_bounds = array<i64: 16, 128>}]} {
    %c0 = arith.constant 0 : index
    %c0_0 = arith.constant 0 : index
    %0 = vector.load %arg1[%c0, %c0_0] : memref<16x128xf32, #tpu.memory_space<vmem>>, vector<16x128xf32>
    %c0_1 = arith.constant 0 : index
    %c0_2 = arith.constant 0 : index
    %1 = vector.load %arg2[%c0_1, %c0_2] : memref<128x512xf32, #tpu.memory_space<vmem>>, vector<128x512xf32>
    %cst = arith.constant dense<0.000000e+00> : vector<16x512xf32>
    %2 = tpu.matmul %0, %1, %cst {dimension_numbers = #tpu.dot_dimension_numbers<[1], [0], [0], [1], [0, 0, 1, 1], [], []>} : vector<16x128xf32>, vector<128x512xf32>, vector<16x512xf32> -> vector<16x512xf32>
    %c0_3 = arith.constant 0 : index
    %c0_4 = arith.constant 0 : index
    %3 = vector.load %arg3[%c0_3, %c0_4] : memref<1x512xf32, #tpu.memory_space<vmem>>, vector<1x512xf32>
    %4 = vector.broadcast %3 : vector<1x512xf32> to vector<16x512xf32>
    %5 = arith.addf %2, %4 : vector<16x512xf32>
    %cst_5 = arith.constant 0.000000e+00 : f32
    %6 = vector.broadcast %cst_5 : f32 to vector<16x512xf32>
    %7 = arith.maximumf %5, %6 : vector<16x512xf32>
    %c0_6 = arith.constant 0 : index
    %c0_7 = arith.constant 0 : index
    %8 = vector.load %arg4[%c0_6, %c0_7] : memref<512x128xf32, #tpu.memory_space<vmem>>, vector<512x128xf32>
    %cst_8 = arith.constant dense<0.000000e+00> : vector<16x128xf32>
    %9 = tpu.matmul %7, %8, %cst_8 {dimension_numbers = #tpu.dot_dimension_numbers<[1], [0], [0], [1], [0, 0, 1, 1], [], []>} : vector<16x512xf32>, vector<512x128xf32>, vector<16x128xf32> -> vector<16x128xf32>
    %c0_9 = arith.constant 0 : index
    %c0_10 = arith.constant 0 : index
    %10 = vector.load %arg5[%c0_9, %c0_10] : memref<1x128xf32, #tpu.memory_space<vmem>>, vector<1x128xf32>
    %11 = vector.broadcast %10 : vector<1x128xf32> to vector<16x128xf32>
    %12 = arith.addf %9, %11 : vector<16x128xf32>
    %c0_11 = arith.constant 0 : index
    %c0_12 = arith.constant 0 : index
    %13 = vector.load %arg6[%c0_11, %c0_12] : memref<16x128xf32, #tpu.memory_space<vmem>>, vector<16x128xf32>
    tpu.vector_store %arg6[%c0_11, %c0_12], %12 {strides = array<i32>} : memref<16x128xf32, #tpu.memory_space<vmem>>, vector<16x128xf32>,
    return
  }
  func.func @transform_0(%arg0: i32) -> (i32, i32) {
    %c0_i32 = arith.constant 0 : i32
    %c0_i32_0 = arith.constant 0 : i32
    return %arg0, %c0_i32 : i32, i32
  }
  func.func @transform_1(%arg0: i32) -> (i32, i32) {
    %c0_i32 = arith.constant 0 : i32
    %c0_i32_0 = arith.constant 0 : i32
    %c0_i32_1 = arith.constant 0 : i32
    return %c0_i32, %c0_i32_0 : i32, i32
  }
  func.func @transform_2(%arg0: i32) -> (i32, i32) {
    %c0_i32 = arith.constant 0 : i32
    %c0_i32_0 = arith.constant 0 : i32
    %c0_i32_1 = arith.constant 0 : i32
    return %c0_i32, %c0_i32_0 : i32, i32
  }
  func.func @transform_3(%arg0: i32) -> (i32, i32) {
    %c0_i32 = arith.constant 0 : i32
    %c0_i32_0 = arith.constant 0 : i32
    %c0_i32_1 = arith.constant 0 : i32
    return %c0_i32, %c0_i32_0 : i32, i32
  }
  func.func @transform_4(%arg0: i32) -> (i32, i32) {
    %c0_i32 = arith.constant 0 : i32
    %c0_i32_0 = arith.constant 0 : i32
    %c0_i32_1 = arith.constant 0 : i32
    return %c0_i32, %c0_i32_0 : i32, i32
  }
  func.func @transform_5(%arg0: i32) -> (i32, i32) {
    %c0_i32 = arith.constant 0 : i32
    %c0_i32_0 = arith.constant 0 : i32
    return %arg0, %c0_i32 : i32, i32
  }
}

</mosaic_0001>

<llo_original>
// kernel: tpu_custom_call.1
$region0: #{tpu_custom_call.1}
  #allocation0 [shape = 'u32[]', space=smem, size = 0x4, offset = 0x4, fixed_abs, tag = 'smem constant byte address 0x4 - core index']
  #allocation1 [shape = 'u32[144,128]{1,0:T(1,128)}', space=vmem, size = 0x12000, scoped, tag = 'internal scratch']
  %s0 = inlined_call_operand.hbm [shape: f32[16,128], index: 0, kind: input, shape index: {}]
  %s1 = inlined_call_operand.hbm [shape: f32[128,512], index: 1, kind: input, shape index: {}]
  %s2 = inlined_call_operand.hbm [shape: f32[1,512], index: 2, kind: input, shape index: {}]
  %s3 = inlined_call_operand.hbm [shape: f32[512,128], index: 3, kind: input, shape index: {}]
  %s4 = inlined_call_operand.vmem [shape: f32[1,128], index: 4, kind: input, shape index: {}]
  %s5 = inlined_call_operand.hbm [shape: f32[16,128], index: 5, kind: output, shape index: {}]
  %s6 = sld [smem:[#allocation0]]
  $region46: #{tpu_custom_call.1} parent=0
    _
  %s8 = ssub.s32 1, %s6
  %s9 = scalar_select 0, %s8, %s6
  $region1: #{tpu_custom_call.1} parent=0
    #allocation2 [shape = 'u8[8192]{0}', space=vmem, size = 0x2000, scoped, tag = 'input window, operand 0, single buffered']
    #allocation3 [shape = 's32[1]{0}', space=sflag, size = 0x4, scoped, tag = 'scoped memory for tpu_custom_call.1']
    #allocation4 [shape = 's32[1]{0}', space=sflag, size = 0x4, scoped, tag = 'scoped memory for tpu_custom_call.1']
    #allocation5 [shape = 'u8[262144]{0}', space=vmem, size = 0x40000, scoped, tag = 'input window, operand 1, single buffered']
    #allocation6 [shape = 's32[1]{0}', space=sflag, size = 0x4, scoped, tag = 'scoped memory for tpu_custom_call.1']
    #allocation7 [shape = 'u8[2048]{0}', space=vmem, size = 0x800, scoped, tag = 'input window, operand 2, single buffered']
    #allocation8 [shape = 'u8[262144]{0}', space=vmem, size = 0x40000, scoped, tag = 'input window, operand 3, single buffered']
    #allocation9 [shape = 's32[1]{0}', space=sflag, size = 0x4, scoped, tag = 'scoped memory for tpu_custom_call.1']
    #allocation10 [shape = 'u8[8192]{0}', space=vmem, size = 0x2000, scoped, tag = 'output window, operand 0, single buffered']
    %10 = vsyncpa [#allocation3], 0
    %11 = vsyncpa [#allocation6], 0
    %12 = vsyncpa [#allocation9], 0
    %13 = vsyncpa [#allocation4], 0
    // Predicated region
    $region2: #{tpu_custom_call.1} parent=1 // pred_check
      _
    $region3: #{tpu_custom_call.1} parent=1 // pred_check_branch
      %15 = sbr.rel (0) target = $region5
    $region4: #{tpu_custom_call.1} parent=1 // pred_region
      %s17 = ssub.s32 256, 256
      %18 = vsyncadd [#allocation3], %s17
      %s19 = sshll.u32 [#allocation2], 4
      %s20 = int_to_ptr.vmem [resolvable:$true] %s19
      %25 = dma.hbm_to_vmem [thread:$0]  %s0, 256, %s20, [#allocation3], 128, 128, 8
    $region5: #{tpu_custom_call.1} parent=1 // pred_fallthru
      _
    // Predicated region
    $region6: #{tpu_custom_call.1} parent=1 // pred_check
      _
    $region7: #{tpu_custom_call.1} parent=1 // pred_check_branch
      %27 = sbr.rel (0) target = $region9
    $region8: #{tpu_custom_call.1} parent=1 // pred_region
      %s29 = ssub.s32 8192, 8192
      %30 = vsyncadd [#allocation6], %s29
      %s31 = sshll.u32 [#allocation5], 4
      %s32 = int_to_ptr.vmem [resolvable:$true] %s31
      %37 = dma.hbm_to_vmem [thread:$0]  %s1, 8192, %s32, [#allocation6], 512, 512, 32
    $region9: #{tpu_custom_call.1} parent=1 // pred_fallthru
      _
    // Predicated region
    $region10: #{tpu_custom_call.1} parent=1 // pred_check
      _
    $region11: #{tpu_custom_call.1} parent=1 // pred_check_branch
      %39 = sbr.rel (0) target = $region13
    $region12: #{tpu_custom_call.1} parent=1 // pred_region
      %s41 = ssub.s32 64, 64
      %42 = vsyncadd [#allocation6], %s41
      %s44 = sshll.u32 [#allocation7], 4
      %s45 = int_to_ptr.vmem [resolvable:$true] %s44
      %47 = dma.hbm_to_vmem [thread:$0]  %s2, 64, %s45, [#allocation6]
    $region13: #{tpu_custom_call.1} parent=1 // pred_fallthru
      _
    // Predicated region
    $region14: #{tpu_custom_call.1} parent=1 // pred_check
      _
    $region15: #{tpu_custom_call.1} parent=1 // pred_check_branch
      %49 = sbr.rel (0) target = $region17
    $region16: #{tpu_custom_call.1} parent=1 // pred_region
      %s51 = ssub.s32 8192, 8192
      %52 = vsyncadd [#allocation9], %s51
      %s53 = sshll.u32 [#allocation8], 4
      %s54 = int_to_ptr.vmem [resolvable:$true] %s53
      %59 = dma.hbm_to_vmem [thread:$0]  %s3, 8192, %s54, [#allocation9], 128, 128, 8
    $region17: #{tpu_custom_call.1} parent=1 // pred_fallthru
      _
    // Predicated region
    $region18: #{tpu_custom_call.1} parent=1 // pred_check
      _
    $region19: #{tpu_custom_call.1} parent=1 // pred_check_branch
      %61 = sbr.rel (0) target = $region21
    $region20: #{tpu_custom_call.1} parent=1 // pred_region
      _
    $region21: #{tpu_custom_call.1} parent=1 // pred_fallthru
      _
    // Predicated region
    $region22: #{tpu_custom_call.1} parent=1 // pred_check
      _
    $region23: #{tpu_custom_call.1} parent=1 // pred_check_branch
      %63 = sbr.rel (0) target = $region25
    $region24: #{tpu_custom_call.1} parent=1 // pred_region
      %64 = dma.done [#allocation3], 256
    $region25: #{tpu_custom_call.1} parent=1 // pred_fallthru
      _
    // Predicated region
    $region26: #{tpu_custom_call.1} parent=1 // pred_check
      _
    $region27: #{tpu_custom_call.1} parent=1 // pred_check_branch
      %66 = sbr.rel (0) target = $region29
    $region28: #{tpu_custom_call.1} parent=1 // pred_region
      %67 = dma.done [#allocation6], 8192
    $region29: #{tpu_custom_call.1} parent=1 // pred_fallthru
      _
    // Predicated region
    $region30: #{tpu_custom_call.1} parent=1 // pred_check
      _
    $region31: #{tpu_custom_call.1} parent=1 // pred_check_branch
      %69 = sbr.rel (0) target = $region33
    $region32: #{tpu_custom_call.1} parent=1 // pred_region
      %70 = dma.done [#allocation6], 64
    $region33: #{tpu_custom_call.1} parent=1 // pred_fallthru
      _
    // Predicated region
    $region34: #{tpu_custom_call.1} parent=1 // pred_check
      _
    $region35: #{tpu_custom_call.1} parent=1 // pred_check_branch
      %72 = sbr.rel (0) target = $region37
    $region36: #{tpu_custom_call.1} parent=1 // pred_region
      %73 = dma.done [#allocation9], 8192
    $region37: #{tpu_custom_call.1} parent=1 // pred_fallthru
      _
    %v74 = vld [vmem:[#allocation2] sm:$0xff]
    %v75 = vld [vmem:[#allocation2 + $0x8] sm:$0xff]
    %v76 = vld [vmem:[#allocation5] sm:$0xff]
    %v77 = vld [vmem:[#allocation5 + $0x8] sm:$0xff]
    %v78 = vld [vmem:[#allocation5 + $0x10] sm:$0xff]
    %v79 = vld [vmem:[#allocation5 + $0x18] sm:$0xff]
    %v80 = vld [vmem:[#allocation5 + $0x20] sm:$0xff]
    %v81 = vld [vmem:[#allocation5 + $0x28] sm:$0xff]
    %v82 = vld [vmem:[#allocation5 + $0x30] sm:$0xff]
    %v83 = vld [vmem:[#allocation5 + $0x38] sm:$0xff]
    %v84 = vld [vmem:[#allocation5 + $0x40] sm:$0xff]
    %v85 = vld [vmem:[#allocation5 + $0x48] sm:$0xff]
    %v86 = vld [vmem:[#allocation5 + $0x50] sm:$0xff]
    %v87 = vld [vmem:[#allocation5 + $0x58] sm:$0xff]
    %v88 = vld [vmem:[#allocation5 + $0x60] sm:$0xff]
    %v89 = vld [vmem:[#allocation5 + $0x68] sm:$0xff]
    %v90 = vld [vmem:[#allocation5 + $0x70] sm:$0xff]
    %v91 = vld [vmem:[#allocation5 + $0x78] sm:$0xff]
    %v92 = vld [vmem:[#allocation5 + $0x80] sm:$0xff]
    %v93 = vld [vmem:[#allocation5 + $0x88] sm:$0xff]
    %v94 = vld [vmem:[#allocation5 + $0x90] sm:$0xff]
    %v95 = vld [vmem:[#allocation5 + $0x98] sm:$0xff]
    %v96 = vld [vmem:[#allocation5 + $0xa0] sm:$0xff]
    %v97 = vld [vmem:[#allocation5 + $0xa8] sm:$0xff]
    %v98 = vld [vmem:[#allocation5 + $0xb0] sm:$0xff]
    %v99 = vld [vmem:[#allocation5 + $0xb8] sm:$0xff]
    %v100 = vld [vmem:[#allocation5 + $0xc0] sm:$0xff]
    %v101 = vld [vmem:[#allocation5 + $0xc8] sm:$0xff]
    %v102 = vld [vmem:[#allocation5 + $0xd0] sm:$0xff]
    %v103 = vld [vmem:[#allocation5 + $0xd8] sm:$0xff]
    %v104 = vld [vmem:[#allocation5 + $0xe0] sm:$0xff]
    %v105 = vld [vmem:[#allocation5 + $0xe8] sm:$0xff]
    %v106 = vld [vmem:[#allocation5 + $0xf0] sm:$0xff]
    %v107 = vld [vmem:[#allocation5 + $0xf8] sm:$0xff]
    %v108 = vld [vmem:[#allocation5 + $0x100] sm:$0xff]
    %v109 = vld [vmem:[#allocation5 + $0x108] sm:$0xff]
    %v110 = vld [vmem:[#allocation5 + $0x110] sm:$0xff]
    %v111 = vld [vmem:[#allocation5 + $0x118] sm:$0xff]
    %v112 = vld [vmem:[#allocation5 + $0x120] sm:$0xff]
    %v113 = vld [vmem:[#allocation5 + $0x128] sm:$0xff]
    %v114 = vld [vmem:[#allocation5 + $0x130] sm:$0xff]
    %v115 = vld [vmem:[#allocation5 + $0x138] sm:$0xff]
    %v116 = vld [vmem:[#allocation5 + $0x140] sm:$0xff]
    %v117 = vld [vmem:[#allocation5 + $0x148] sm:$0xff]
    %v118 = vld [vmem:[#allocation5 + $0x150] sm:$0xff]
    %v119 = vld [vmem:[#allocation5 + $0x158] sm:$0xff]
    %v120 = vld [vmem:[#allocation5 + $0x160] sm:$0xff]
    %v121 = vld [vmem:[#allocation5 + $0x168] sm:$0xff]
    %v122 = vld [vmem:[#allocation5 + $0x170] sm:$0xff]
    %v123 = vld [vmem:[#allocation5 + $0x178] sm:$0xff]
    %v124 = vld [vmem:[#allocation5 + $0x180] sm:$0xff]
    %v125 = vld [vmem:[#allocation5 + $0x188] sm:$0xff]
    %v126 = vld [vmem:[#allocation5 + $0x190] sm:$0xff]
    %v127 = vld [vmem:[#allocation5 + $0x198] sm:$0xff]
    %v128 = vld [vmem:[#allocation5 + $0x1a0] sm:$0xff]
    %v129 = vld [vmem:[#allocation5 + $0x1a8] sm:$0xff]
    %v130 = vld [vmem:[#allocation5 + $0x1b0] sm:$0xff]
    %v131 = vld [vmem:[#allocation5 + $0x1b8] sm:$0xff]
    %v132 = vld [vmem:[#allocation5 + $0x1c0] sm:$0xff]
    %v133 = vld [vmem:[#allocation5 + $0x1c8] sm:$0xff]
    %v134 = vld [vmem:[#allocation5 + $0x1d0] sm:$0xff]
    %v135 = vld [vmem:[#allocation5 + $0x1d8] sm:$0xff]
    %v136 = vld [vmem:[#allocation5 + $0x1e0] sm:$0xff]
    %v137 = vld [vmem:[#allocation5 + $0x1e8] sm:$0xff]
    %v138 = vld [vmem:[#allocation5 + $0x1f0] sm:$0xff]
    %v139 = vld [vmem:[#allocation5 + $0x1f8] sm:$0xff]
    %v140 = vld [vmem:[#allocation7] sm:$0xf]
    %v142 = vlaneseq
    %v143 = vshrl.u32 %v142, 7
    %v144 = vsub.s32 0, %v143
    %v145 = vrot.slane %v140, %v144
    %v146 = vlaneseq
    %v147 = vshrl.u32 %v146, 7
    %v148 = vsub.s32 1, %v147
    %v149 = vrot.slane %v140, %v148
    %v150 = vlaneseq
    %v151 = vshrl.u32 %v150, 7
    %v152 = vsub.s32 2, %v151
    %v153 = vrot.slane %v140, %v152
    %v154 = vlaneseq
    %v155 = vshrl.u32 %v154, 7
    %v156 = vsub.s32 3, %v155
    %v157 = vrot.slane %v140, %v156
    %162 = vmatprep.subr.mxu0 %v137
    %163 = vmatpush1.msra.mxu0 %v136
    %164 = vmatprep.subr.mxu0 %v133
    %165 = vmatpush1.msra.mxu0 %v132
    %166 = vmatprep.subr.mxu0 %v129
    %167 = vmatpush1.msra.mxu0 %v128
    %168 = vmatprep.subr.mxu0 %v125
    %169 = vmatpush1.msra.mxu0 %v124
    %170 = vmatprep.subr.mxu0 %v121
    %171 = vmatpush1.msra.mxu0 %v120
    %172 = vmatprep.subr.mxu0 %v117
    %173 = vmatpush1.msra.mxu0 %v116
    %174 = vmatprep.subr.mxu0 %v113
    %175 = vmatpush1.msra.mxu0 %v112
    %176 = vmatprep.subr.mxu0 %v109
    %177 = vmatpush1.msra.mxu0 %v108
    %178 = vmatprep.subr.mxu0 %v105
    %179 = vmatpush1.msra.mxu0 %v104
    %180 = vmatprep.subr.mxu0 %v101
    %181 = vmatpush1.msra.mxu0 %v100
    %182 = vmatprep.subr.mxu0 %v97
    %183 = vmatpush1.msra.mxu0 %v96
    %184 = vmatprep.subr.mxu0 %v93
    %185 = vmatpush1.msra.mxu0 %v92
    %186 = vmatprep.subr.mxu0 %v89
    %187 = vmatpush1.msra.mxu0 %v88
    %188 = vmatprep.subr.mxu0 %v85
    %189 = vmatpush1.msra.mxu0 %v84
    %190 = vmatprep.subr.mxu0 %v81
    %191 = vmatpush1.msra.mxu0 %v80
    %192 = vmatprep.subr.mxu0 %v77
    %193 = vmatpush1.msra.mxu0 %v76
    %194 = vmatprep.subr.mxu0 0.0
    %195 = vmatpush2.msra.mxu0 0.0
    %196 = vmatprep.subr.mxu0 0.0
    %197 = vmatpush2.msra.mxu0 0.0
    %198 = vmatprep.subr.mxu0 0.0
    %199 = vmatpush2.msra.mxu0 0.0
    %200 = vmatprep.subr.mxu0 0.0
    %201 = vmatpush2.msra.mxu0 0.0
    %202 = vmatprep.subr.mxu0 0.0
    %203 = vmatpush2.msra.mxu0 0.0
    %204 = vmatprep.subr.mxu0 0.0
    %205 = vmatpush2.msra.mxu0 0.0
    %206 = vmatprep.subr.mxu0 0.0
    %207 = vmatpush2.msra.mxu0 0.0
    %208 = vmatprep.subr.mxu0 0.0
    %209 = vmatpush2.msra.mxu0 0.0
    %210 = vmatprep.subr.mxu0 0.0
    %211 = vmatpush2.msra.mxu0 0.0
    %212 = vmatprep.subr.mxu0 0.0
    %213 = vmatpush2.msra.mxu0 0.0
    %214 = vmatprep.subr.mxu0 0.0
    %215 = vmatpush2.msra.mxu0 0.0
    %216 = vmatprep.subr.mxu0 0.0
    %217 = vmatpush2.msra.mxu0 0.0
    %218 = vmatprep.subr.mxu0 0.0
    %219 = vmatpush2.msra.mxu0 0.0
    %220 = vmatprep.subr.mxu0 0.0
    %221 = vmatpush2.msra.mxu0 0.0
    %222 = vmatprep.subr.mxu0 0.0
    %223 = vmatpush2.msra.mxu0 0.0
    %224 = vmatprep.subr.mxu0 0.0
    %225 = vmatpush2.msra.mxu0 0.0
    %226 = vmatprep.mubr.f32.mxu0 0.0
    %227 = vmatmul.mubr.f32.gmra.mxu0 %v74
    %v228 = vpop.f32.mrf.mxu0
    %v229 = vadd.f32 %v145, %v228
    %v230 = vpop.f32.mrf.mxu0
    %v231 = vadd.f32 %v149, %v230
    %232 = vmatprep.mubr.f32.mxu0 0.0
    %233 = vmatmul.mubr.f32.gmra.mxu0 %v75
    %v234 = vpop.f32.mrf.mxu0
    %v235 = vadd.f32 %v145, %v234
    %v236 = vpop.f32.mrf.mxu0
    %v237 = vadd.f32 %v149, %v236
    %238 = vdwg.mxu0
    %239 = vmatprep.subr.mxu0 %v139
    %240 = vmatpush1.msra.mxu0 %v138
    %241 = vmatprep.subr.mxu0 %v135
    %242 = vmatpush1.msra.mxu0 %v134
    %243 = vmatprep.subr.mxu0 %v131
    %244 = vmatpush1.msra.mxu0 %v130
    %245 = vmatprep.subr.mxu0 %v127
    %246 = vmatpush1.msra.mxu0 %v126
    %247 = vmatprep.subr.mxu0 %v123
    %248 = vmatpush1.msra.mxu0 %v122
    %249 = vmatprep.subr.mxu0 %v119
    %250 = vmatpush1.msra.mxu0 %v118
    %251 = vmatprep.subr.mxu0 %v115
    %252 = vmatpush1.msra.mxu0 %v114
    %253 = vmatprep.subr.mxu0 %v111
    %254 = vmatpush1.msra.mxu0 %v110
    %255 = vmatprep.subr.mxu0 %v107
    %256 = vmatpush1.msra.mxu0 %v106
    %257 = vmatprep.subr.mxu0 %v103
    %258 = vmatpush1.msra.mxu0 %v102
    %259 = vmatprep.subr.mxu0 %v99
    %260 = vmatpush1.msra.mxu0 %v98
    %261 = vmatprep.subr.mxu0 %v95
    %262 = vmatpush1.msra.mxu0 %v94
    %263 = vmatprep.subr.mxu0 %v91
    %264 = vmatpush1.msra.mxu0 %v90
    %265 = vmatprep.subr.mxu0 %v87
    %266 = vmatpush1.msra.mxu0 %v86
    %267 = vmatprep.subr.mxu0 %v83
    %268 = vmatpush1.msra.mxu0 %v82
    %269 = vmatprep.subr.mxu0 %v79
    %270 = vmatpush1.msra.mxu0 %v78
    %271 = vmatprep.subr.mxu0 0.0
    %272 = vmatpush2.msra.mxu0 0.0
    %273 = vmatprep.subr.mxu0 0.0
    %274 = vmatpush2.msra.mxu0 0.0
    %275 = vmatprep.subr.mxu0 0.0
    %276 = vmatpush2.msra.mxu0 0.0
    %277 = vmatprep.subr.mxu0 0.0
    %278 = vmatpush2.msra.mxu0 0.0
    %279 = vmatprep.subr.mxu0 0.0
    %280 = vmatpush2.msra.mxu0 0.0
    %281 = vmatprep.subr.mxu0 0.0
    %282 = vmatpush2.msra.mxu0 0.0
    %283 = vmatprep.subr.mxu0 0.0
    %284 = vmatpush2.msra.mxu0 0.0
    %285 = vmatprep.subr.mxu0 0.0
    %286 = vmatpush2.msra.mxu0 0.0
    %287 = vmatprep.subr.mxu0 0.0
    %288 = vmatpush2.msra.mxu0 0.0
    %289 = vmatprep.subr.mxu0 0.0
    %290 = vmatpush2.msra.mxu0 0.0
    %291 = vmatprep.subr.mxu0 0.0
    %292 = vmatpush2.msra.mxu0 0.0
    %293 = vmatprep.subr.mxu0 0.0
    %294 = vmatpush2.msra.mxu0 0.0
    %295 = vmatprep.subr.mxu0 0.0
    %296 = vmatpush2.msra.mxu0 0.0
    %297 = vmatprep.subr.mxu0 0.0
    %298 = vmatpush2.msra.mxu0 0.0
    %299 = vmatprep.subr.mxu0 0.0
    %300 = vmatpush2.msra.mxu0 0.0
    %301 = vmatprep.subr.mxu0 0.0
    %302 = vmatpush2.msra.mxu0 0.0
    %303 = vmatprep.mubr.f32.mxu0 0.0
    %304 = vmatmul.mubr.f32.gmra.mxu0 %v74
    %v305 = vpop.f32.mrf.mxu0
    %v306 = vadd.f32 %v153, %v305
    %v307 = vpop.f32.mrf.mxu0
    %v308 = vadd.f32 %v157, %v307
    %309 = vmatprep.mubr.f32.mxu0 0.0
    %310 = vmatmul.mubr.f32.gmra.mxu0 %v75
    %v311 = vpop.f32.mrf.mxu0
    %v312 = vadd.f32 %v153, %v311
    %v313 = vpop.f32.mrf.mxu0
    %v314 = vadd.f32 %v157, %v313
    %315 = vdwg.mxu0
    %v316 = vmax.f32 %v229, 0.0
    %v317 = vmax.f32 %v231, 0.0
    %v318 = vmax.f32 %v306, 0.0
    %v319 = vmax.f32 %v308, 0.0
    %v320 = vmax.f32 %v235, 0.0
    %v321 = vmax.f32 %v237, 0.0
    %v322 = vmax.f32 %v312, 0.0
    %v323 = vmax.f32 %v314, 0.0
    %v324 = vld [vmem:[#allocation8] sm:$0xff]
    %v325 = vld [vmem:[#allocation8 + $0x8] sm:$0xff]
    %v326 = vld [vmem:[#allocation8 + $0x10] sm:$0xff]
    %v327 = vld [vmem:[#allocation8 + $0x18] sm:$0xff]
    %v328 = vld [vmem:[#allocation8 + $0x20] sm:$0xff]
    %v329 = vld [vmem:[#allocation8 + $0x28] sm:$0xff]
    %v330 = vld [vmem:[#allocation8 + $0x30] sm:$0xff]
    %v331 = vld [vmem:[#allocation8 + $0x38] sm:$0xff]
    %v332 = vld [vmem:[#allocation8 + $0x40] sm:$0xff]
    %v333 = vld [vmem:[#allocation8 + $0x48] sm:$0xff]
    %v334 = vld [vmem:[#allocation8 + $0x50] sm:$0xff]
    %v335 = vld [vmem:[#allocation8 + $0x58] sm:$0xff]
    %v336 = vld [vmem:[#allocation8 + $0x60] sm:$0xff]
    %v337 = vld [vmem:[#allocation8 + $0x68] sm:$0xff]
    %v338 = vld [vmem:[#allocation8 + $0x70] sm:$0xff]
    %v339 = vld [vmem:[#allocation8 + $0x78] sm:$0xff]
    %v340 = vld [vmem:[#allocation8 + $0x80] sm:$0xff]
    %v341 = vld [vmem:[#allocation8 + $0x88] sm:$0xff]
    %v342 = vld [vmem:[#allocation8 + $0x90] sm:$0xff]
    %v343 = vld [vmem:[#allocation8 + $0x98] sm:$0xff]
    %v344 = vld [vmem:[#allocation8 + $0xa0] sm:$0xff]
    %v345 = vld [vmem:[#allocation8 + $0xa8] sm:$0xff]
    %v346 = vld [vmem:[#allocation8 + $0xb0] sm:$0xff]
    %v347 = vld [vmem:[#allocation8 + $0xb8] sm:$0xff]
    %v348 = vld [vmem:[#allocation8 + $0xc0] sm:$0xff]
    %v349 = vld [vmem:[#allocation8 + $0xc8] sm:$0xff]
    %v350 = vld [vmem:[#allocation8 + $0xd0] sm:$0xff]
    %v351 = vld [vmem:[#allocation8 + $0xd8] sm:$0xff]
    %v352 = vld [vmem:[#allocation8 + $0xe0] sm:$0xff]
    %v353 = vld [vmem:[#allocation8 + $0xe8] sm:$0xff]
    %v354 = vld [vmem:[#allocation8 + $0xf0] sm:$0xff]
    %v355 = vld [vmem:[#allocation8 + $0xf8] sm:$0xff]
    %v356 = vld [vmem:[#allocation8 + $0x100] sm:$0xff]
    %v357 = vld [vmem:[#allocation8 + $0x108] sm:$0xff]
    %v358 = vld [vmem:[#allocation8 + $0x110] sm:$0xff]
    %v359 = vld [vmem:[#allocation8 + $0x118] sm:$0xff]
    %v360 = vld [vmem:[#allocation8 + $0x120] sm:$0xff]
    %v361 = vld [vmem:[#allocation8 + $0x128] sm:$0xff]
    %v362 = vld [vmem:[#allocation8 + $0x130] sm:$0xff]
    %v363 = vld [vmem:[#allocation8 + $0x138] sm:$0xff]
    %v364 = vld [vmem:[#allocation8 + $0x140] sm:$0xff]
    %v365 = vld [vmem:[#allocation8 + $0x148] sm:$0xff]
    %v366 = vld [vmem:[#allocation8 + $0x150] sm:$0xff]
    %v367 = vld [vmem:[#allocation8 + $0x158] sm:$0xff]
    %v368 = vld [vmem:[#allocation8 + $0x160] sm:$0xff]
    %v369 = vld [vmem:[#allocation8 + $0x168] sm:$0xff]
    %v370 = vld [vmem:[#allocation8 + $0x170] sm:$0xff]
    %v371 = vld [vmem:[#allocation8 + $0x178] sm:$0xff]
    %v372 = vld [vmem:[#allocation8 + $0x180] sm:$0xff]
    %v373 = vld [vmem:[#allocation8 + $0x188] sm:$0xff]
    %v374 = vld [vmem:[#allocation8 + $0x190] sm:$0xff]
    %v375 = vld [vmem:[#allocation8 + $0x198] sm:$0xff]
    %v376 = vld [vmem:[#allocation8 + $0x1a0] sm:$0xff]
    %v377 = vld [vmem:[#allocation8 + $0x1a8] sm:$0xff]
    %v378 = vld [vmem:[#allocation8 + $0x1b0] sm:$0xff]
    %v379 = vld [vmem:[#allocation8 + $0x1b8] sm:$0xff]
    %v380 = vld [vmem:[#allocation8 + $0x1c0] sm:$0xff]
    %v381 = vld [vmem:[#allocation8 + $0x1c8] sm:$0xff]
    %v382 = vld [vmem:[#allocation8 + $0x1d0] sm:$0xff]
    %v383 = vld [vmem:[#allocation8 + $0x1d8] sm:$0xff]
    %v384 = vld [vmem:[#allocation8 + $0x1e0] sm:$0xff]
    %v385 = vld [vmem:[#allocation8 + $0x1e8] sm:$0xff]
    %v386 = vld [vmem:[#allocation8 + $0x1f0] sm:$0xff]
    %v387 = vld [vmem:[#allocation8 + $0x1f8] sm:$0xff]
    %v388 = vld [vmem:[%s4] sm:$0x1]
    %v390 = vlaneseq
    %v391 = vshrl.u32 %v390, 7
    %v392 = vsub.s32 0, %v391
    %v393 = vrot.slane %v388, %v392
    %395 = vmatprep.subr.mxu0 0.0
    %396 = vmatpush1.msra.mxu0 %v339
    %397 = vmatprep.subr.mxu0 0.0
    %398 = vmatpush1.msra.mxu0 %v338
    %399 = vmatprep.subr.mxu0 0.0
    %400 = vmatpush1.msra.mxu0 %v337
    %401 = vmatprep.subr.mxu0 0.0
    %402 = vmatpush1.msra.mxu0 %v336
    %403 = vmatprep.subr.mxu0 0.0
    %404 = vmatpush1.msra.mxu0 %v335
    %405 = vmatprep.subr.mxu0 0.0
    %406 = vmatpush1.msra.mxu0 %v334
    %407 = vmatprep.subr.mxu0 0.0
    %408 = vmatpush1.msra.mxu0 %v333
    %409 = vmatprep.subr.mxu0 0.0
    %410 = vmatpush1.msra.mxu0 %v332
    %411 = vmatprep.subr.mxu0 0.0
    %412 = vmatpush1.msra.mxu0 %v331
    %413 = vmatprep.subr.mxu0 0.0
    %414 = vmatpush1.msra.mxu0 %v330
    %415 = vmatprep.subr.mxu0 0.0
    %416 = vmatpush1.msra.mxu0 %v329
    %417 = vmatprep.subr.mxu0 0.0
    %418 = vmatpush1.msra.mxu0 %v328
    %419 = vmatprep.subr.mxu0 0.0
    %420 = vmatpush1.msra.mxu0 %v327
    %421 = vmatprep.subr.mxu0 0.0
    %422 = vmatpush1.msra.mxu0 %v326
    %423 = vmatprep.subr.mxu0 0.0
    %424 = vmatpush1.msra.mxu0 %v325
    %425 = vmatprep.subr.mxu0 0.0
    %426 = vmatpush1.msra.mxu0 %v324
    %427 = vmatprep.subr.mxu0 0.0
    %428 = vmatpush2.msra.mxu0 %v355
    %429 = vmatprep.subr.mxu0 0.0
    %430 = vmatpush2.msra.mxu0 %v354
    %431 = vmatprep.subr.mxu0 0.0
    %432 = vmatpush2.msra.mxu0 %v353
    %433 = vmatprep.subr.mxu0 0.0
    %434 = vmatpush2.msra.mxu0 %v352
    %435 = vmatprep.subr.mxu0 0.0
    %436 = vmatpush2.msra.mxu0 %v351
    %437 = vmatprep.subr.mxu0 0.0
    %438 = vmatpush2.msra.mxu0 %v350
    %439 = vmatprep.subr.mxu0 0.0
    %440 = vmatpush2.msra.mxu0 %v349
    %441 = vmatprep.subr.mxu0 0.0
    %442 = vmatpush2.msra.mxu0 %v348
    %443 = vmatprep.subr.mxu0 0.0
    %444 = vmatpush2.msra.mxu0 %v347
    %445 = vmatprep.subr.mxu0 0.0
    %446 = vmatpush2.msra.mxu0 %v346
    %447 = vmatprep.subr.mxu0 0.0
    %448 = vmatpush2.msra.mxu0 %v345
    %449 = vmatprep.subr.mxu0 0.0
    %450 = vmatpush2.msra.mxu0 %v344
    %451 = vmatprep.subr.mxu0 0.0
    %452 = vmatpush2.msra.mxu0 %v343
    %453 = vmatprep.subr.mxu0 0.0
    %454 = vmatpush2.msra.mxu0 %v342
    %455 = vmatprep.subr.mxu0 0.0
    %456 = vmatpush2.msra.mxu0 %v341
    %457 = vmatprep.subr.mxu0 0.0
    %458 = vmatpush2.msra.mxu0 %v340
    %459 = vmatprep.mubr.f32.mxu0 %v317
    %460 = vmatmul.mubr.f32.gmra.mxu0 %v316
    %v461 = vpop.f32.mrf.mxu0
    %v462 = vadd.f32 %v393, %v461
    %v463 = vpop.f32.mrf.mxu0
    %464 = vmatprep.mubr.f32.mxu0 %v321
    %465 = vmatmul.mubr.f32.gmra.mxu0 %v320
    %v466 = vpop.f32.mrf.mxu0
    %v467 = vadd.f32 %v393, %v466
    %v468 = vpop.f32.mrf.mxu0
    %469 = vdwg.mxu0
    %470 = vmatprep.subr.mxu0 0.0
    %471 = vmatpush1.msra.mxu0 %v371
    %472 = vmatprep.subr.mxu0 0.0
    %473 = vmatpush1.msra.mxu0 %v370
    %474 = vmatprep.subr.mxu0 0.0
    %475 = vmatpush1.msra.mxu0 %v369
    %476 = vmatprep.subr.mxu0 0.0
    %477 = vmatpush1.msra.mxu0 %v368
    %478 = vmatprep.subr.mxu0 0.0
    %479 = vmatpush1.msra.mxu0 %v367
    %480 = vmatprep.subr.mxu0 0.0
    %481 = vmatpush1.msra.mxu0 %v366
    %482 = vmatprep.subr.mxu0 0.0
    %483 = vmatpush1.msra.mxu0 %v365
    %484 = vmatprep.subr.mxu0 0.0
    %485 = vmatpush1.msra.mxu0 %v364
    %486 = vmatprep.subr.mxu0 0.0
    %487 = vmatpush1.msra.mxu0 %v363
    %488 = vmatprep.subr.mxu0 0.0
    %489 = vmatpush1.msra.mxu0 %v362
    %490 = vmatprep.subr.mxu0 0.0
    %491 = vmatpush1.msra.mxu0 %v361
    %492 = vmatprep.subr.mxu0 0.0
    %493 = vmatpush1.msra.mxu0 %v360
    %494 = vmatprep.subr.mxu0 0.0
    %495 = vmatpush1.msra.mxu0 %v359
    %496 = vmatprep.subr.mxu0 0.0
    %497 = vmatpush1.msra.mxu0 %v358
    %498 = vmatprep.subr.mxu0 0.0
    %499 = vmatpush1.msra.mxu0 %v357
    %500 = vmatprep.subr.mxu0 0.0
    %501 = vmatpush1.msra.mxu0 %v356
    %502 = vmatprep.subr.mxu0 0.0
    %503 = vmatpush2.msra.mxu0 %v387
    %504 = vmatprep.subr.mxu0 0.0
    %505 = vmatpush2.msra.mxu0 %v386
    %506 = vmatprep.subr.mxu0 0.0
    %507 = vmatpush2.msra.mxu0 %v385
    %508 = vmatprep.subr.mxu0 0.0
    %509 = vmatpush2.msra.mxu0 %v384
    %510 = vmatprep.subr.mxu0 0.0
    %511 = vmatpush2.msra.mxu0 %v383
    %512 = vmatprep.subr.mxu0 0.0
    %513 = vmatpush2.msra.mxu0 %v382
    %514 = vmatprep.subr.mxu0 0.0
    %515 = vmatpush2.msra.mxu0 %v381
    %516 = vmatprep.subr.mxu0 0.0
    %517 = vmatpush2.msra.mxu0 %v380
    %518 = vmatprep.subr.mxu0 0.0
    %519 = vmatpush2.msra.mxu0 %v379
    %520 = vmatprep.subr.mxu0 0.0
    %521 = vmatpush2.msra.mxu0 %v378
    %522 = vmatprep.subr.mxu0 0.0
    %523 = vmatpush2.msra.mxu0 %v377
    %524 = vmatprep.subr.mxu0 0.0
    %525 = vmatpush2.msra.mxu0 %v376
    %526 = vmatprep.subr.mxu0 0.0
    %527 = vmatpush2.msra.mxu0 %v375
    %528 = vmatprep.subr.mxu0 0.0
    %529 = vmatpush2.msra.mxu0 %v374
    %530 = vmatprep.subr.mxu0 0.0
    %531 = vmatpush2.msra.mxu0 %v373
    %532 = vmatprep.subr.mxu0 0.0
    %533 = vmatpush2.msra.mxu0 %v372
    %534 = vmatprep.mubr.f32.mxu0 %v319
    %535 = vmatmul.mubr.f32.gmra.mxu0 %v318
    %v536 = vpop.f32.mrf.mxu0
    %v537 = vadd.f32 %v462, %v536
    %v538 = vpop.f32.mrf.mxu0
    %539 = vmatprep.mubr.f32.mxu0 %v323
    %540 = vmatmul.mubr.f32.gmra.mxu0 %v322
    %v541 = vpop.f32.mrf.mxu0
    %v542 = vadd.f32 %v467, %v541
    %v543 = vpop.f32.mrf.mxu0
    %544 = vdwg.mxu0
    %545 = vst [vmem:[#allocation10] sm:$0xff] %v537
    %546 = vst [vmem:[#allocation10 + $0x8] sm:$0xff] %v542
    // Predicated region
    $region38: #{tpu_custom_call.1} parent=1 // pred_check
      _
    $region39: #{tpu_custom_call.1} parent=1 // pred_check_branch
      %548 = sbr.rel (0) target = $region41
    $region40: #{tpu_custom_call.1} parent=1 // pred_region
      %s550 = ssub.s32 256, 256
      %551 = vsyncadd [#allocation4], %s550
      %s552 = sshll.u32 [#allocation10], 4
      %s553 = int_to_ptr.vmem [resolvable:$true] %s552
      %558 = dma.vmem_to_hbm [thread:$0]  %s553, 256, %s5, [#allocation4], 128, 128, 8
    $region41: #{tpu_custom_call.1} parent=1 // pred_fallthru
      _
    // Predicated region
    $region42: #{tpu_custom_call.1} parent=1 // pred_check
      _
    $region43: #{tpu_custom_call.1} parent=1 // pred_check_branch
      %560 = sbr.rel (0) target = $region45
    $region44: #{tpu_custom_call.1} parent=1 // pred_region
      %561 = dma.done [#allocation4], 256
    $region45: #{tpu_custom_call.1} parent=1 // pred_fallthru
      _
    %562 = vsyncpa [#allocation3], 1
    %563 = vsyncpa [#allocation6], 1
    %564 = vsyncpa [#allocation9], 1
    %565 = vsyncpa [#allocation4], 1

</llo_original>
